<compile_context>
chip_gen: v7x
topology: tpu7x:2x2x1
jax: 0.10.0
libtpu: 0.0.40
codegen_flags: <defaults>
</compile_context>

<pallas_src>
import functools

import jax
import jax.numpy as jnp
from jax.experimental import pallas as pl
from jax.experimental.pallas import tpu as pltpu


def _hardswish(v):
    # PyTorch Hardswish: x * relu6(x + 3) / 6
    return v * jnp.clip(v + 3.0, 0.0, 6.0) * (1.0 / 6.0)


def _hardsigmoid(v):
    # PyTorch Hardsigmoid: relu6(x + 3) / 6
    return jnp.clip(v + 3.0, 0.0, 6.0) * (1.0 / 6.0)


def ca_kernel(x_ref, w1t_ref, b1_ref, w2t_ref, b2_ref, o_ref, *, inv_hw):
    # x_ref: (TN, C, HW); w1t_ref: (C, Cr) [BN1 scale folded];
    # w2t_ref: (Cr, C) [BN2 scale folded]; b1_ref: (1, Cr); b2_ref: (1, C)

    # Global average pool over spatial.  Read straight from the pipelined
    # input buffer (no full-tile value kept live); accumulate in f32.
    gap = jnp.sum(x_ref[...], axis=-1, dtype=jnp.float32) * inv_hw   # (TN, C)

    # 1x1 conv (C -> Cr) with BN1 scale folded into the weights, then shift.
    h = jnp.dot(gap, w1t_ref[...], preferred_element_type=jnp.float32)
    h = _hardswish(h + b1_ref[...])                                   # (TN, Cr)

    # 1x1 conv (Cr -> C) with BN2 scale folded into the weights, then shift.
    y = jnp.dot(h, w2t_ref[...], preferred_element_type=jnp.float32)
    y = _hardsigmoid(y + b2_ref[...])                                 # (TN, C)

    # Broadcast the per-channel gate over spatial; multiply in the input
    # dtype (full-rate bf16 on v6e/v7x, f32 stays f32).  Re-index x_ref so
    # the second use is also a streaming VMEM load of the pipelined buffer.
    gate = y.astype(o_ref.dtype)[:, :, None]                          # (TN, C, 1)
    o_ref[...] = (x_ref[...] * gate).astype(o_ref.dtype)


def _tpu_generation_info():
    """Return (vmem_capacity_bytes, num_tensorcores) with safe fallbacks."""
    vmem_cap = 128 << 20
    try:
        info = pltpu.get_tpu_info()
        vmem_cap = int(getattr(info, "vmem_capacity_bytes", vmem_cap))
    except Exception:
        pass
    # v7x-class parts: 64 MiB VMEM per TensorCore, 2 TCs/chip.
    # v5e/v6e: 128 MiB VMEM, single TC.
    num_cores = 2 if vmem_cap <= (64 << 20) else 1
    return vmem_cap, num_cores


def _choose_tn(n, bytes_per_sample, budget, num_cores):
    """Largest divisor of n whose block fits `budget`.  On multi-TensorCore
    parts, prefer a grid of length >= num_cores so megacore sharding has work
    for every core; on single-core parts just take the biggest block."""
    divisors = [d for d in range(1, n + 1) if n % d == 0]
    fitting = [d for d in divisors if d * bytes_per_sample <= budget] or [1]
    if num_cores > 1:
        multi = [d for d in fitting if (n // d) >= num_cores]
        if multi:
            return max(multi)
    return max(fitting)


def ca_layer(x, w1, w2, s1, b1, s2, b2):
    """x: (N, C, H, W); w1: (Cr, C); w2: (C, Cr); s*/b*: folded BN scale/shift."""
    N, C, H, W = x.shape
    HW = H * W
    Cr = w1.shape[0]
    itemsize = jnp.dtype(x.dtype).itemsize

    # No host-side padding: block last two dims equal the full array dims, so
    # unaligned HW only costs masked tail stores (no extra HBM passes).
    x_flat = x.reshape(N, C, HW)

    # Fold BN scales into the 1x1 conv weights (columns of the transposed
    # weights are scaled); only the shifts remain as biases.
    w1t = jnp.asarray(w1).T * jnp.asarray(s1)[None, :]            # (C, Cr)
    w2t = jnp.asarray(w2).T * jnp.asarray(s2)[None, :]            # (Cr, C)
    b1v = jnp.asarray(b1).reshape(1, Cr)
    b2v = jnp.asarray(b2).reshape(1, C)

    # Generation-aware block budget and VMEM ceiling.
    vmem_cap, num_cores = _tpu_generation_info()
    if vmem_cap <= (64 << 20):        # v7x-class: 64 MiB physical VMEM
        block_budget = 6 << 20
        vmem_cap_limit = 48 << 20
    else:                             # v5e / v6e: 128 MiB physical VMEM
        block_budget = 12 << 20
        vmem_cap_limit = 96 << 20

    bytes_per_sample = C * HW * itemsize
    TN = _choose_tn(N, bytes_per_sample, block_budget, num_cores)
    grid = (N // TN,)

    block_bytes = TN * bytes_per_sample
    weight_bytes = (w1t.size + w2t.size + b1v.size + b2v.size) * 4

    # Feasibility check: single-pass needs a whole (C, HW) sample resident.
    # If 2 in + 2 out buffers of even one sample blow the cap, drop to
    # single-buffered streaming for x instead of failing VMEM allocation.
    # TODO(synk): two-pass fallback (GAP pass + gating pass) for samples whose
    # single (C, HW) tile does not fit VMEM at all.
    single_buffer = (4 * block_bytes + weight_bytes + (2 << 20)) > vmem_cap_limit
    if single_buffer:
        x_in_spec = pl.BlockSpec((TN, C, HW), lambda i: (i, 0, 0),
                                 pipeline_mode=pl.Buffered(1))
        x_out_spec = pl.BlockSpec((TN, C, HW), lambda i: (i, 0, 0),
                                  pipeline_mode=pl.Buffered(1))
        vmem_limit = int(min(vmem_cap_limit,
                             max(16 << 20, 2 * block_bytes + weight_bytes + (2 << 20))))
    else:
        x_in_spec = pl.BlockSpec((TN, C, HW), lambda i: (i, 0, 0))
        x_out_spec = pl.BlockSpec((TN, C, HW), lambda i: (i, 0, 0))
        vmem_limit = int(min(vmem_cap_limit,
                             max(16 << 20, 4 * block_bytes + weight_bytes + (2 << 20))))

    cost = pl.CostEstimate(
        flops=N * (4 * C * Cr + 4 * C * HW),
        transcendentals=0,
        bytes_accessed=2 * N * C * HW * itemsize + weight_bytes,
    )

    kernel = functools.partial(ca_kernel, inv_hw=1.0 / HW)

    out = pl.pallas_call(
        kernel,
        out_shape=jax.ShapeDtypeStruct((N, C, HW), x.dtype),
        grid_spec=pltpu.PrefetchScalarGridSpec(
            num_scalar_prefetch=0,
            grid=grid,
            in_specs=[
                x_in_spec,
                pl.BlockSpec((C, Cr), lambda i: (0, 0)),
                pl.BlockSpec((1, Cr), lambda i: (0, 0)),
                pl.BlockSpec((Cr, C), lambda i: (0, 0)),
                pl.BlockSpec((1, C), lambda i: (0, 0)),
            ],
            out_specs=x_out_spec,
        ),
        compiler_params=pltpu.CompilerParams(
            dimension_semantics=("parallel",),
            vmem_limit_bytes=vmem_limit,
        ),
        cost_estimate=cost,
    )(x_flat, w1t, b1v, w2t, b2v)

    return out.reshape(N, C, H, W)


def _reference(x, w1, w2, s1, b1, s2, b2):
    """Pure-JAX reference of the same (eval-mode-BN) forward pass."""
    gap = jnp.mean(x.astype(jnp.float32), axis=(2, 3))          # (N, C)
    h = gap @ w1.T                                              # (N, Cr)
    h = h * s1 + b1
    h = h * jnp.clip(h + 3.0, 0.0, 6.0) / 6.0
    y = h @ w2.T                                                # (N, C)
    y = y * s2 + b2
    y = jnp.clip(y + 3.0, 0.0, 6.0) / 6.0
    return x * y[:, :, None, None]


if __name__ == "__main__":
    # Module config: channel=32, reduction=4  ->  hidden = 8
    N, C, H, W = 2, 32, 16, 16
    reduction = 4
    Cr = C // reduction
    eps = 1e-5

    key = jax.random.PRNGKey(0)
    kx, kw1, kw2, kg1, kb1, km1, kv1, kg2, kb2, km2, kv2 = jax.random.split(key, 11)

    x = jax.random.normal(kx, (N, C, H, W), dtype=jnp.float32)

    # Conv weights: (out_ch, in_ch) for 1x1 convs (kernel spatial dims squeezed).
    w1 = jax.random.normal(kw1, (Cr, C), dtype=jnp.float32) * 0.2
    w2 = jax.random.normal(kw2, (C, Cr), dtype=jnp.float32) * 0.2

    # BatchNorm params (deterministic, then folded into scale/shift).
    g1 = 1.0 + 0.1 * jax.random.normal(kg1, (Cr,), dtype=jnp.float32)
    be1 = 0.1 * jax.random.normal(kb1, (Cr,), dtype=jnp.float32)
    m1 = 0.1 * jax.random.normal(km1, (Cr,), dtype=jnp.float32)
    v1 = jax.random.uniform(kv1, (Cr,), minval=0.5, maxval=1.5, dtype=jnp.float32)

    g2 = 1.0 + 0.1 * jax.random.normal(kg2, (C,), dtype=jnp.float32)
    be2 = 0.1 * jax.random.normal(kb2, (C,), dtype=jnp.float32)
    m2 = 0.1 * jax.random.normal(km2, (C,), dtype=jnp.float32)
    v2 = jax.random.uniform(kv2, (C,), minval=0.5, maxval=1.5, dtype=jnp.float32)

    s1 = g1 / jnp.sqrt(v1 + eps)
    b1 = be1 - m1 * s1
    s2 = g2 / jnp.sqrt(v2 + eps)
    b2 = be2 - m2 * s2

    out = ca_layer(x, w1, w2, s1, b1, s2, b2)
    out = jax.block_until_ready(out)

    ref = _reference(x, w1, w2, s1, b1, s2, b2)
    assert out.shape == x.shape
    assert jnp.allclose(out, ref, atol=1e-5, rtol=1e-5), "mismatch vs reference"

    print("KERNEL_OK")
</pallas_src>

<mosaic_0001>
module attributes {stable_mosaic.version = 11 : i64} {
  func.func @ca_kernel(%arg0: i32, %arg1: memref<2x32x256xf32, #tpu.memory_space<vmem>>, %arg2: memref<32x8xf32, #tpu.memory_space<vmem>>, %arg3: memref<1x8xf32, #tpu.memory_space<vmem>>, %arg4: memref<8x32xf32, #tpu.memory_space<vmem>>, %arg5: memref<1x32xf32, #tpu.memory_space<vmem>>, %arg6: memref<2x32x256xf32, #tpu.memory_space<vmem>>) attributes {dimension_semantics = [#tpu.dimension_semantics<parallel>], iteration_bounds = array<i64: 1>, scalar_prefetch = 0 : i64, scratch_operands = 0 : i64, tpu.core_type = #tpu.core_type<tc>, window_params = [{transform_indices = @transform_0, window_bounds = array<i64: 2, 32, 256>}, {pipeline_mode = #tpu.pipeline_mode<synchronous>, transform_indices = @transform_1, window_bounds = array<i64: 32, 8>}, {pipeline_mode = #tpu.pipeline_mode<synchronous>, transform_indices = @transform_2, window_bounds = array<i64: 1, 8>}, {pipeline_mode = #tpu.pipeline_mode<synchronous>, transform_indices = @transform_3, window_bounds = array<i64: 8, 32>}, {pipeline_mode = #tpu.pipeline_mode<synchronous>, transform_indices = @transform_4, window_bounds = array<i64: 1, 32>}, {transform_indices = @transform_5, window_bounds = array<i64: 2, 32, 256>}]} {
    %c0 = arith.constant 0 : index
    %c0_0 = arith.constant 0 : index
    %c0_1 = arith.constant 0 : index
    %0 = vector.load %arg1[%c0, %c0_0, %c0_1] : memref<2x32x256xf32, #tpu.memory_space<vmem>>, vector<2x32x256xf32>
    %cst = arith.constant dense<0.000000e+00> : vector<2x32xf32>
    %1 = vector.multi_reduction <add>, %0, %cst [2] : vector<2x32x256xf32> to vector<2x32xf32>
    %cst_2 = arith.constant 3.906250e-03 : f32
    %2 = vector.broadcast %cst_2 : f32 to vector<2x32xf32>
    %3 = arith.mulf %1, %2 : vector<2x32xf32>
    %c0_3 = arith.constant 0 : index
    %c0_4 = arith.constant 0 : index
    %4 = vector.load %arg2[%c0_3, %c0_4] : memref<32x8xf32, #tpu.memory_space<vmem>>, vector<32x8xf32>
    %cst_5 = arith.constant dense<0.000000e+00> : vector<2x8xf32>
    %5 = tpu.matmul %3, %4, %cst_5 {dimension_numbers = #tpu.dot_dimension_numbers<[1], [0], [0], [1], [0, 0, 1, 1], [], []>} : vector<2x32xf32>, vector<32x8xf32>, vector<2x8xf32> -> vector<2x8xf32>
    %c0_6 = arith.constant 0 : index
    %c0_7 = arith.constant 0 : index
    %6 = vector.load %arg3[%c0_6, %c0_7] : memref<1x8xf32, #tpu.memory_space<vmem>>, vector<1x8xf32>
    %7 = vector.broadcast %6 : vector<1x8xf32> to vector<2x8xf32>
    %8 = arith.addf %5, %7 : vector<2x8xf32>
    %cst_8 = arith.constant 3.000000e+00 : f32
    %9 = vector.broadcast %cst_8 : f32 to vector<2x8xf32>
    %10 = arith.addf %8, %9 : vector<2x8xf32>
    %cst_9 = arith.constant 0.000000e+00 : f32
    %cst_10 = arith.constant 6.000000e+00 : f32
    %11 = vector.broadcast %cst_9 : f32 to vector<2x8xf32>
    %12 = arith.maximumf %11, %10 : vector<2x8xf32>
    %13 = vector.broadcast %cst_10 : f32 to vector<2x8xf32>
    %14 = arith.minimumf %13, %12 : vector<2x8xf32>
    %15 = arith.mulf %8, %14 : vector<2x8xf32>
    %cst_11 = arith.constant 0.166666672 : f32
    %16 = vector.broadcast %cst_11 : f32 to vector<2x8xf32>
    %17 = arith.mulf %15, %16 : vector<2x8xf32>
    %c0_12 = arith.constant 0 : index
    %c0_13 = arith.constant 0 : index
    %18 = vector.load %arg4[%c0_12, %c0_13] : memref<8x32xf32, #tpu.memory_space<vmem>>, vector<8x32xf32>
    %cst_14 = arith.constant dense<0.000000e+00> : vector<2x32xf32>
    %19 = tpu.matmul %17, %18, %cst_14 {dimension_numbers = #tpu.dot_dimension_numbers<[1], [0], [0], [1], [0, 0, 1, 1], [], []>} : vector<2x8xf32>, vector<8x32xf32>, vector<2x32xf32> -> vector<2x32xf32>
    %c0_15 = arith.constant 0 : index
    %c0_16 = arith.constant 0 : index
    %20 = vector.load %arg5[%c0_15, %c0_16] : memref<1x32xf32, #tpu.memory_space<vmem>>, vector<1x32xf32>
    %21 = vector.broadcast %20 : vector<1x32xf32> to vector<2x32xf32>
    %22 = arith.addf %19, %21 : vector<2x32xf32>
    %cst_17 = arith.constant 3.000000e+00 : f32
    %23 = vector.broadcast %cst_17 : f32 to vector<2x32xf32>
    %24 = arith.addf %22, %23 : vector<2x32xf32>
    %cst_18 = arith.constant 0.000000e+00 : f32
    %cst_19 = arith.constant 6.000000e+00 : f32
    %25 = vector.broadcast %cst_18 : f32 to vector<2x32xf32>
    %26 = arith.maximumf %25, %24 : vector<2x32xf32>
    %27 = vector.broadcast %cst_19 : f32 to vector<2x32xf32>
    %28 = arith.minimumf %27, %26 : vector<2x32xf32>
    %cst_20 = arith.constant 0.166666672 : f32
    %29 = vector.broadcast %cst_20 : f32 to vector<2x32xf32>
    %30 = arith.mulf %28, %29 : vector<2x32xf32>
    %31 = vector.shape_cast %30 : vector<2x32xf32> to vector<2x32x1xf32>
    %c0_21 = arith.constant 0 : index
    %c0_22 = arith.constant 0 : index
    %c0_23 = arith.constant 0 : index
    %32 = vector.load %arg1[%c0_21, %c0_22, %c0_23] : memref<2x32x256xf32, #tpu.memory_space<vmem>>, vector<2x32x256xf32>
    %33 = vector.broadcast %31 : vector<2x32x1xf32> to vector<2x32x256xf32>
    %34 = arith.mulf %32, %33 : vector<2x32x256xf32>
    %c0_24 = arith.constant 0 : index
    %c0_25 = arith.constant 0 : index
    %c0_26 = arith.constant 0 : index
    %35 = vector.load %arg6[%c0_24, %c0_25, %c0_26] : memref<2x32x256xf32, #tpu.memory_space<vmem>>, vector<2x32x256xf32>
    tpu.vector_store %arg6[%c0_24, %c0_25, %c0_26], %34 {strides = array<i32>} : memref<2x32x256xf32, #tpu.memory_space<vmem>>, vector<2x32x256xf32>,
    return
  }
  func.func @transform_0(%arg0: i32) -> (i32, i32, i32) {
    %c0_i32 = arith.constant 0 : i32
    %c0_i32_0 = arith.constant 0 : i32
    %c0_i32_1 = arith.constant 0 : i32
    return %arg0, %c0_i32, %c0_i32_0 : i32, i32, i32
  }
  func.func @transform_1(%arg0: i32) -> (i32, i32) {
    %c0_i32 = arith.constant 0 : i32
    %c0_i32_0 = arith.constant 0 : i32
    %c0_i32_1 = arith.constant 0 : i32
    return %c0_i32, %c0_i32_0 : i32, i32
  }
  func.func @transform_2(%arg0: i32) -> (i32, i32) {
    %c0_i32 = arith.constant 0 : i32
    %c0_i32_0 = arith.constant 0 : i32
    %c0_i32_1 = arith.constant 0 : i32
    return %c0_i32, %c0_i32_0 : i32, i32
  }
  func.func @transform_3(%arg0: i32) -> (i32, i32) {
    %c0_i32 = arith.constant 0 : i32
    %c0_i32_0 = arith.constant 0 : i32
    %c0_i32_1 = arith.constant 0 : i32
    return %c0_i32, %c0_i32_0 : i32, i32
  }
  func.func @transform_4(%arg0: i32) -> (i32, i32) {
    %c0_i32 = arith.constant 0 : i32
    %c0_i32_0 = arith.constant 0 : i32
    %c0_i32_1 = arith.constant 0 : i32
    return %c0_i32, %c0_i32_0 : i32, i32
  }
  func.func @transform_5(%arg0: i32) -> (i32, i32, i32) {
    %c0_i32 = arith.constant 0 : i32
    %c0_i32_0 = arith.constant 0 : i32
    %c0_i32_1 = arith.constant 0 : i32
    return %arg0, %c0_i32, %c0_i32_0 : i32, i32, i32
  }
}

</mosaic_0001>

<llo_original>
// kernel: tpu_custom_call.1
$region0: #{tpu_custom_call.1}
  #allocation0 [shape = 'u32[]', space=smem, size = 0x4, offset = 0x4, fixed_abs, tag = 'smem constant byte address 0x4 - core index']
  #allocation1 [shape = 'u32[144,128]{1,0:T(1,128)}', space=vmem, size = 0x12000, scoped, tag = 'internal scratch']
  %s0 = inlined_call_operand.hbm [shape: f32[2,32,256], index: 0, kind: input, shape index: {}]
  %s1 = inlined_call_operand.vmem [shape: f32[32,8], index: 1, kind: input, shape index: {}]
  %s2 = inlined_call_operand.vmem [shape: f32[1,8], index: 2, kind: input, shape index: {}]
  %s3 = inlined_call_operand.vmem [shape: f32[8,32], index: 3, kind: input, shape index: {}]
  %s4 = inlined_call_operand.vmem [shape: f32[1,32], index: 4, kind: input, shape index: {}]
  %s5 = inlined_call_operand.hbm [shape: f32[2,32,256], index: 5, kind: output, shape index: {}]
  %s6 = sld [smem:[#allocation0]]
  $region34: #{tpu_custom_call.1} parent=0
    _
  %s8 = ssub.s32 1, %s6
  %s9 = scalar_select 0, %s8, %s6
  $region1: #{tpu_custom_call.1} parent=0
    #allocation2 [shape = 'u8[65536]{0}', space=vmem, size = 0x10000, scoped, tag = 'input window, operand 0, single buffered']
    #allocation3 [shape = 's32[1]{0}', space=sflag, size = 0x4, scoped, tag = 'scoped memory for tpu_custom_call.1']
    #allocation4 [shape = 's32[1]{0}', space=sflag, size = 0x4, scoped, tag = 'scoped memory for tpu_custom_call.1']
    #allocation5 [shape = 'u8[65536]{0}', space=vmem, size = 0x10000, scoped, tag = 'output window, operand 0, single buffered']
    %10 = vsyncpa [#allocation3], 0
    %11 = vsyncpa [#allocation4], 0
    // Predicated region
    $region2: #{tpu_custom_call.1} parent=1 // pred_check
      _
    $region3: #{tpu_custom_call.1} parent=1 // pred_check_branch
      %13 = sbr.rel (0) target = $region5
    $region4: #{tpu_custom_call.1} parent=1 // pred_region
      %s15 = ssub.s32 2048, 2048
      %16 = vsyncadd [#allocation3], %s15
      %s17 = sshll.u32 [#allocation2], 4
      %s18 = int_to_ptr.vmem [resolvable:$true] %s17
      %23 = dma.hbm_to_vmem [thread:$0]  %s0, 2048, %s18, [#allocation3], 256, 256, 16
    $region5: #{tpu_custom_call.1} parent=1 // pred_fallthru
      _
    // Predicated region
    $region6: #{tpu_custom_call.1} parent=1 // pred_check
      _
    $region7: #{tpu_custom_call.1} parent=1 // pred_check_branch
      %25 = sbr.rel (0) target = $region9
    $region8: #{tpu_custom_call.1} parent=1 // pred_region
      _
    $region9: #{tpu_custom_call.1} parent=1 // pred_fallthru
      _
    // Predicated region
    $region10: #{tpu_custom_call.1} parent=1 // pred_check
      _
    $region11: #{tpu_custom_call.1} parent=1 // pred_check_branch
      %27 = sbr.rel (0) target = $region13
    $region12: #{tpu_custom_call.1} parent=1 // pred_region
      _
    $region13: #{tpu_custom_call.1} parent=1 // pred_fallthru
      _
    // Predicated region
    $region14: #{tpu_custom_call.1} parent=1 // pred_check
      _
    $region15: #{tpu_custom_call.1} parent=1 // pred_check_branch
      %29 = sbr.rel (0) target = $region17
    $region16: #{tpu_custom_call.1} parent=1 // pred_region
      _
    $region17: #{tpu_custom_call.1} parent=1 // pred_fallthru
      _
    // Predicated region
    $region18: #{tpu_custom_call.1} parent=1 // pred_check
      _
    $region19: #{tpu_custom_call.1} parent=1 // pred_check_branch
      %31 = sbr.rel (0) target = $region21
    $region20: #{tpu_custom_call.1} parent=1 // pred_region
      _
    $region21: #{tpu_custom_call.1} parent=1 // pred_fallthru
      _
    // Predicated region
    $region22: #{tpu_custom_call.1} parent=1 // pred_check
      _
    $region23: #{tpu_custom_call.1} parent=1 // pred_check_branch
      %33 = sbr.rel (0) target = $region25
    $region24: #{tpu_custom_call.1} parent=1 // pred_region
      %34 = dma.done [#allocation3], 2048
    $region25: #{tpu_custom_call.1} parent=1 // pred_fallthru
      _
    %v35 = vld [vmem:[#allocation2] sm:$0xff]
    %v36 = vld [vmem:[#allocation2 + $0x8] sm:$0xff]
    %v37 = vld [vmem:[#allocation2 + $0x10] sm:$0xff]
    %v38 = vld [vmem:[#allocation2 + $0x18] sm:$0xff]
    %v39 = vld [vmem:[#allocation2 + $0x20] sm:$0xff]
    %v40 = vld [vmem:[#allocation2 + $0x28] sm:$0xff]
    %v41 = vld [vmem:[#allocation2 + $0x30] sm:$0xff]
    %v42 = vld [vmem:[#allocation2 + $0x38] sm:$0xff]
    %v43 = vld [vmem:[#allocation2 + $0x40] sm:$0xff]
    %v44 = vld [vmem:[#allocation2 + $0x48] sm:$0xff]
    %v45 = vld [vmem:[#allocation2 + $0x50] sm:$0xff]
    %v46 = vld [vmem:[#allocation2 + $0x58] sm:$0xff]
    %v47 = vld [vmem:[#allocation2 + $0x60] sm:$0xff]
    %v48 = vld [vmem:[#allocation2 + $0x68] sm:$0xff]
    %v49 = vld [vmem:[#allocation2 + $0x70] sm:$0xff]
    %v50 = vld [vmem:[#allocation2 + $0x78] sm:$0xff]
    %v51 = vadd.f32 %v35, %v36
    %52 = vadd.xlane.f32.xlu0 %v51
    %v53 = vpop.xlane.xlu0 %52
    %v54 = vadd.f32 %v37, %v38
    %55 = vadd.xlane.f32.xlu0 %v54
    %v56 = vpop.xlane.xlu0 %55
    %v57 = vadd.f32 %v39, %v40
    %58 = vadd.xlane.f32.xlu0 %v57
    %v59 = vpop.xlane.xlu0 %58
    %v60 = vadd.f32 %v41, %v42
    %61 = vadd.xlane.f32.xlu0 %v60
    %v62 = vpop.xlane.xlu0 %61
    %v63 = vadd.f32 %v43, %v44
    %64 = vadd.xlane.f32.xlu0 %v63
    %v65 = vpop.xlane.xlu0 %64
    %v66 = vadd.f32 %v45, %v46
    %67 = vadd.xlane.f32.xlu0 %v66
    %v68 = vpop.xlane.xlu0 %67
    %v69 = vadd.f32 %v47, %v48
    %70 = vadd.xlane.f32.xlu0 %v69
    %v71 = vpop.xlane.xlu0 %70
    %v72 = vadd.f32 %v49, %v50
    %73 = vadd.xlane.f32.xlu0 %v72
    %v74 = vpop.xlane.xlu0 %73
    %v75 = vmul.f32 %v53, 0.00390625
    %v76 = vmul.f32 %v56, 0.00390625
    %v77 = vmul.f32 %v59, 0.00390625
    %v78 = vmul.f32 %v62, 0.00390625
    %v79 = vmul.f32 %v65, 0.00390625
    %v80 = vmul.f32 %v68, 0.00390625
    %v81 = vmul.f32 %v71, 0.00390625
    %v82 = vmul.f32 %v74, 0.00390625
    %v83 = vld [vmem:[%s1] sm:$0xff]
    %v84 = vld [vmem:[%s1 + $0x8] sm:$0xff]
    %v85 = vld [vmem:[%s1 + $0x10] sm:$0xff]
    %v86 = vld [vmem:[%s1 + $0x18] sm:$0xff]
    %v87 = vld [vmem:[%s2] sm:$0x1]
    %v89 = vlaneseq
    %v90 = vshrl.u32 %v89, 7
    %v91 = vsub.s32 0, %v90
    %v92 = vrot.slane %v87, %v91
    %v102 = vlaneseq
    %v103 = vand.u32 %v102, 127
    %v104 = vlaneseq
    %v105 = vshrl.u32 %v104, 7
    %v106 = vsub.s32 %v103, %v105
    %v107 = vrot.slane %v75, %v106
    %v108 = vadd.s32 %v103, 4294967288
    %v109 = vlaneseq
    %v110 = vshrl.u32 %v109, 7
    %v111 = vsub.s32 %v108, %v110
    %v112 = vrot.slane %v76, %v111
    %vm113 = vcmask 130112
    %v114 = vsel %vm113, %v112, %v107
    %v115 = vadd.s32 %v103, 4294967280
    %v116 = vlaneseq
    %v117 = vshrl.u32 %v116, 7
    %v118 = vsub.s32 %v115, %v117
    %v119 = vrot.slane %v77, %v118
    %vm120 = vcmask 195712
    %v121 = vsel %vm120, %v119, %v114
    %v122 = vadd.s32 %v103, 4294967272
    %v123 = vlaneseq
    %v124 = vshrl.u32 %v123, 7
    %v125 = vsub.s32 %v122, %v124
    %v126 = vrot.slane %v78, %v125
    %vm127 = vcmask 261312
    %v128 = vsel %vm127, %v126, %v121
    %v129 = vlaneseq
    %v130 = vshrl.u32 %v129, 7
    %v131 = vsub.s32 %v103, %v130
    %v132 = vrot.slane %v79, %v131
    %v133 = vlaneseq
    %v134 = vshrl.u32 %v133, 7
    %v135 = vsub.s32 %v108, %v134
    %v136 = vrot.slane %v80, %v135
    %v137 = vsel %vm113, %v136, %v132
    %v138 = vlaneseq
    %v139 = vshrl.u32 %v138, 7
    %v140 = vsub.s32 %v115, %v139
    %v141 = vrot.slane %v81, %v140
    %v142 = vsel %vm120, %v141, %v137
    %v143 = vlaneseq
    %v144 = vshrl.u32 %v143, 7
    %v145 = vsub.s32 %v122, %v144
    %v146 = vrot.slane %v82, %v145
    %v147 = vsel %vm127, %v146, %v142
    %vm148 = vcmask 1041409
    %v149 = vsel %vm148, %v147, %v128
    %vm150 = vcmask 261120
    %v151 = vsel %vm150, %v149, 0
    %153 = vmatprep.subr.mxu0 0.0
    %154 = vmatpush1.msra.mxu0 %v83
    %155 = vmatprep.subr.mxu0 0.0
    %156 = vmatpush1.msra.mxu0 %v84
    %157 = vmatprep.subr.mxu0 0.0
    %158 = vmatpush1.msra.mxu0 %v85
    %159 = vmatprep.subr.mxu0 0.0
    %160 = vmatpush1.msra.mxu0 %v86
    %161 = vmatprep.subr.mxu0 0.0
    %162 = vmatpush1.msra.mxu0 0.0
    %163 = vmatprep.subr.mxu0 0.0
    %164 = vmatpush1.msra.mxu0 0.0
    %165 = vmatprep.subr.mxu0 0.0
    %166 = vmatpush1.msra.mxu0 0.0
    %167 = vmatprep.subr.mxu0 0.0
    %168 = vmatpush1.msra.mxu0 0.0
    %169 = vmatprep.subr.mxu0 0.0
    %170 = vmatpush1.msra.mxu0 0.0
    %171 = vmatprep.subr.mxu0 0.0
    %172 = vmatpush1.msra.mxu0 0.0
    %173 = vmatprep.subr.mxu0 0.0
    %174 = vmatpush1.msra.mxu0 0.0
    %175 = vmatprep.subr.mxu0 0.0
    %176 = vmatpush1.msra.mxu0 0.0
    %177 = vmatprep.subr.mxu0 0.0
    %178 = vmatpush1.msra.mxu0 0.0
    %179 = vmatprep.subr.mxu0 0.0
    %180 = vmatpush1.msra.mxu0 0.0
    %181 = vmatprep.subr.mxu0 0.0
    %182 = vmatpush1.msra.mxu0 0.0
    %183 = vmatprep.subr.mxu0 0.0
    %184 = vmatpush1.msra.mxu0 0.0
    %185 = vmatprep.subr.mxu0 0.0
    %186 = vmatpush1.msra.mxu0 0.0
    %187 = vmatprep.subr.mxu0 0.0
    %188 = vmatpush1.msra.mxu0 0.0
    %189 = vmatprep.subr.mxu0 0.0
    %190 = vmatpush1.msra.mxu0 0.0
    %191 = vmatprep.subr.mxu0 0.0
    %192 = vmatpush1.msra.mxu0 0.0
    %193 = vmatprep.subr.mxu0 0.0
    %194 = vmatpush1.msra.mxu0 0.0
    %195 = vmatprep.subr.mxu0 0.0
    %196 = vmatpush1.msra.mxu0 0.0
    %197 = vmatprep.subr.mxu0 0.0
    %198 = vmatpush1.msra.mxu0 0.0
    %199 = vmatprep.subr.mxu0 0.0
    %200 = vmatpush1.msra.mxu0 0.0
    %201 = vmatprep.subr.mxu0 0.0
    %202 = vmatpush1.msra.mxu0 0.0
    %203 = vmatprep.subr.mxu0 0.0
    %204 = vmatpush1.msra.mxu0 0.0
    %205 = vmatprep.subr.mxu0 0.0
    %206 = vmatpush1.msra.mxu0 0.0
    %207 = vmatprep.subr.mxu0 0.0
    %208 = vmatpush1.msra.mxu0 0.0
    %209 = vmatprep.subr.mxu0 0.0
    %210 = vmatpush1.msra.mxu0 0.0
    %211 = vmatprep.subr.mxu0 0.0
    %212 = vmatpush1.msra.mxu0 0.0
    %213 = vmatprep.subr.mxu0 0.0
    %214 = vmatpush1.msra.mxu0 0.0
    %215 = vmatprep.subr.mxu0 0.0
    %216 = vmatpush1.msra.mxu0 0.0
    %217 = vmatprep.mubr.f32.mxu0 0.0
    %218 = vmatmul.mubr.f32.gmra.mrb[0].mxu0 %v151
    %v219 = vpop.f32.mrb[0].mxu0
    %v220 = vadd.f32 %v92, %v219
    %v221 = vpop.f32.mrb[0].mxu0
    %222 = vdwg.mxu0
    %v223 = vadd.f32 %v220, 3.0
    %v224 = vmax.f32 %v223, 0.0
    %v225 = vmin.f32 %v224, 6.0
    %v226 = vmul.f32 %v220, %v225
    %v227 = vmul.f32 %v226, 0.16666667
    %v228 = vld [vmem:[%s3] sm:$0xff]
    %v229 = vld [vmem:[%s4] sm:$0x1]
    %v231 = vlaneseq
    %v232 = vshrl.u32 %v231, 7
    %v233 = vsub.s32 0, %v232
    %v234 = vrot.slane %v229, %v233
    %vm236 = vcmask 64512
    %v238 = vsel %vm236, %v227, 0
    %240 = vmatprep.subr.mxu0 0.0
    %241 = vmatpush1.msra.mxu0 %v228
    %242 = vmatprep.subr.mxu0 0.0
    %243 = vmatpush1.msra.mxu0 0.0
    %244 = vmatprep.subr.mxu0 0.0
    %245 = vmatpush1.msra.mxu0 0.0
    %246 = vmatprep.subr.mxu0 0.0
    %247 = vmatpush1.msra.mxu0 0.0
    %248 = vmatprep.subr.mxu0 0.0
    %249 = vmatpush1.msra.mxu0 0.0
    %250 = vmatprep.subr.mxu0 0.0
    %251 = vmatpush1.msra.mxu0 0.0
    %252 = vmatprep.subr.mxu0 0.0
    %253 = vmatpush1.msra.mxu0 0.0
    %254 = vmatprep.subr.mxu0 0.0
    %255 = vmatpush1.msra.mxu0 0.0
    %256 = vmatprep.subr.mxu0 0.0
    %257 = vmatpush1.msra.mxu0 0.0
    %258 = vmatprep.subr.mxu0 0.0
    %259 = vmatpush1.msra.mxu0 0.0
    %260 = vmatprep.subr.mxu0 0.0
    %261 = vmatpush1.msra.mxu0 0.0
    %262 = vmatprep.subr.mxu0 0.0
    %263 = vmatpush1.msra.mxu0 0.0
    %264 = vmatprep.subr.mxu0 0.0
    %265 = vmatpush1.msra.mxu0 0.0
    %266 = vmatprep.subr.mxu0 0.0
    %267 = vmatpush1.msra.mxu0 0.0
    %268 = vmatprep.subr.mxu0 0.0
    %269 = vmatpush1.msra.mxu0 0.0
    %270 = vmatprep.subr.mxu0 0.0
    %271 = vmatpush1.msra.mxu0 0.0
    %272 = vmatprep.subr.mxu0 0.0
    %273 = vmatpush1.msra.mxu0 0.0
    %274 = vmatprep.subr.mxu0 0.0
    %275 = vmatpush1.msra.mxu0 0.0
    %276 = vmatprep.subr.mxu0 0.0
    %277 = vmatpush1.msra.mxu0 0.0
    %278 = vmatprep.subr.mxu0 0.0
    %279 = vmatpush1.msra.mxu0 0.0
    %280 = vmatprep.subr.mxu0 0.0
    %281 = vmatpush1.msra.mxu0 0.0
    %282 = vmatprep.subr.mxu0 0.0
    %283 = vmatpush1.msra.mxu0 0.0
    %284 = vmatprep.subr.mxu0 0.0
    %285 = vmatpush1.msra.mxu0 0.0
    %286 = vmatprep.subr.mxu0 0.0
    %287 = vmatpush1.msra.mxu0 0.0
    %288 = vmatprep.subr.mxu0 0.0
    %289 = vmatpush1.msra.mxu0 0.0
    %290 = vmatprep.subr.mxu0 0.0
    %291 = vmatpush1.msra.mxu0 0.0
    %292 = vmatprep.subr.mxu0 0.0
    %293 = vmatpush1.msra.mxu0 0.0
    %294 = vmatprep.subr.mxu0 0.0
    %295 = vmatpush1.msra.mxu0 0.0
    %296 = vmatprep.subr.mxu0 0.0
    %297 = vmatpush1.msra.mxu0 0.0
    %298 = vmatprep.subr.mxu0 0.0
    %299 = vmatpush1.msra.mxu0 0.0
    %300 = vmatprep.subr.mxu0 0.0
    %301 = vmatpush1.msra.mxu0 0.0
    %302 = vmatprep.subr.mxu0 0.0
    %303 = vmatpush1.msra.mxu0 0.0
    %304 = vmatprep.mubr.f32.mxu0 0.0
    %305 = vmatmul.mubr.f32.gmra.mrb[0].mxu0 %v238
    %v306 = vpop.f32.mrb[0].mxu0
    %v307 = vadd.f32 %v234, %v306
    %v308 = vpop.f32.mrb[0].mxu0
    %309 = vdwg.mxu0
    %v310 = vadd.f32 %v307, 3.0
    %v311 = vmax.f32 %v310, 0.0
    %v312 = vmin.f32 %v311, 6.0
    %v313 = vmul.f32 %v312, 0.16666667
    %v314 = vlaneseq
    %v315 = vshrl.u32 %v314, 7
    %v316 = vsub.s32 0, %v315
    %v317 = vrot.slane %v313, %v316
    %319 = vbcast.lane.b32.xlu0 %v317, 256
    %v320 = vpop.permute.xlu0 %319
    %s322 = sor.u32 256, 8
    %323 = vbcast.lane.b32.xlu0 %v317, %s322
    %v324 = vpop.permute.xlu0 %323
    %s326 = sor.u32 256, 16
    %327 = vbcast.lane.b32.xlu0 %v317, %s326
    %v328 = vpop.permute.xlu0 %327
    %s330 = sor.u32 256, 24
    %331 = vbcast.lane.b32.xlu0 %v317, %s330
    %v332 = vpop.permute.xlu0 %331
    %v333 = vlaneseq
    %v334 = vshrl.u32 %v333, 7
    %v335 = vsub.s32 1, %v334
    %v336 = vrot.slane %v313, %v335
    %338 = vbcast.lane.b32.xlu0 %v336, 256
    %v339 = vpop.permute.xlu0 %338
    %s341 = sor.u32 256, 8
    %342 = vbcast.lane.b32.xlu0 %v336, %s341
    %v343 = vpop.permute.xlu0 %342
    %s345 = sor.u32 256, 16
    %346 = vbcast.lane.b32.xlu0 %v336, %s345
    %v347 = vpop.permute.xlu0 %346
    %s349 = sor.u32 256, 24
    %350 = vbcast.lane.b32.xlu0 %v336, %s349
    %v351 = vpop.permute.xlu0 %350
    %v352 = vmul.f32 %v35, %v320
    %v353 = vmul.f32 %v36, %v320
    %v354 = vmul.f32 %v37, %v324
    %v355 = vmul.f32 %v38, %v324
    %v356 = vmul.f32 %v39, %v328
    %v357 = vmul.f32 %v40, %v328
    %v358 = vmul.f32 %v41, %v332
    %v359 = vmul.f32 %v42, %v332
    %v360 = vmul.f32 %v43, %v339
    %v361 = vmul.f32 %v44, %v339
    %v362 = vmul.f32 %v45, %v343
    %v363 = vmul.f32 %v46, %v343
    %v364 = vmul.f32 %v47, %v347
    %v365 = vmul.f32 %v48, %v347
    %v366 = vmul.f32 %v49, %v351
    %v367 = vmul.f32 %v50, %v351
    %368 = vst [vmem:[#allocation5] sm:$0xff] %v352
    %369 = vst [vmem:[#allocation5 + $0x8] sm:$0xff] %v353
    %370 = vst [vmem:[#allocation5 + $0x10] sm:$0xff] %v354
    %371 = vst [vmem:[#allocation5 + $0x18] sm:$0xff] %v355
    %372 = vst [vmem:[#allocation5 + $0x20] sm:$0xff] %v356
    %373 = vst [vmem:[#allocation5 + $0x28] sm:$0xff] %v357
    %374 = vst [vmem:[#allocation5 + $0x30] sm:$0xff] %v358
    %375 = vst [vmem:[#allocation5 + $0x38] sm:$0xff] %v359
    %376 = vst [vmem:[#allocation5 + $0x40] sm:$0xff] %v360
    %377 = vst [vmem:[#allocation5 + $0x48] sm:$0xff] %v361
    %378 = vst [vmem:[#allocation5 + $0x50] sm:$0xff] %v362
    %379 = vst [vmem:[#allocation5 + $0x58] sm:$0xff] %v363
    %380 = vst [vmem:[#allocation5 + $0x60] sm:$0xff] %v364
    %381 = vst [vmem:[#allocation5 + $0x68] sm:$0xff] %v365
    %382 = vst [vmem:[#allocation5 + $0x70] sm:$0xff] %v366
    %383 = vst [vmem:[#allocation5 + $0x78] sm:$0xff] %v367
    // Predicated region
    $region26: #{tpu_custom_call.1} parent=1 // pred_check
      _
    $region27: #{tpu_custom_call.1} parent=1 // pred_check_branch
      %385 = sbr.rel (0) target = $region29
    $region28: #{tpu_custom_call.1} parent=1 // pred_region
      %s387 = ssub.s32 2048, 2048
      %388 = vsyncadd [#allocation4], %s387
      %s389 = sshll.u32 [#allocation5], 4
      %s390 = int_to_ptr.vmem [resolvable:$true] %s389
      %395 = dma.vmem_to_hbm [thread:$0]  %s390, 2048, %s5, [#allocation4], 256, 256, 16
    $region29: #{tpu_custom_call.1} parent=1 // pred_fallthru
      _
    // Predicated region
    $region30: #{tpu_custom_call.1} parent=1 // pred_check
      _
    $region31: #{tpu_custom_call.1} parent=1 // pred_check_branch
      %397 = sbr.rel (0) target = $region33
    $region32: #{tpu_custom_call.1} parent=1 // pred_region
      %398 = dma.done [#allocation4], 2048
    $region33: #{tpu_custom_call.1} parent=1 // pred_fallthru
      _
    %399 = vsyncpa [#allocation3], 1
    %400 = vsyncpa [#allocation4], 1

</llo_original>
